<compile_context>
chip_gen: v7x
topology: tpu7x:2x2x1
jax: 0.10.0
libtpu: 0.0.40
codegen_flags: <defaults>
</compile_context>

<pallas_src>
import functools

import jax
import jax.numpy as jnp
from jax.experimental import pallas as pl
from jax.experimental.pallas import tpu as pltpu


def _round_up(x, m):
    return ((x + m - 1) // m) * m


def _pick_tile(n, cap, mult):
    """Tile size (multiple of `mult`, <= cap) minimizing (#tiles, padding), then
    preferring the larger tile."""
    best_key, best_t = None, mult
    hi = min(cap, _round_up(n, mult))
    for t in range(mult, hi + 1, mult):
        tiles = -(-n // t)
        pad = tiles * t - n
        key = (tiles, pad, -t)
        if best_key is None or key < best_key:
            best_key, best_t = key, t
    return best_t


def _selfsim_kernel(pred_ref, tgt_row_ref, tgt_colT_ref, col_sq_ref, out_ref,
                    lhs_ref, lhs_sq_ref, *, TM, TN, n_valid, mask_cols):
    # pred_ref / tgt_row_ref: (1, TM, D)   row blocks, resident across j
    # tgt_colT_ref:           (1, D, TN)   pre-transposed target column block
    # col_sq_ref:             (1, 1, TN)   hoisted column squared norms (f32)
    # out_ref:                (1, 1, 8, 128) per-(b, i) partial-sum slab
    # lhs_ref:                (2*TM, D)    scratch: stacked [target_rows; pred_rows]
    # lhs_sq_ref:             (2*TM, 1)    scratch: their squared norms
    j = pl.program_id(2)

    @pl.when(j == 0)
    def _init_and_hoist_rows():
        out_ref[...] = jnp.zeros_like(out_ref)
        t_row = tgt_row_ref[0].astype(jnp.float32)       # (TM, D)
        p_row = pred_ref[0].astype(jnp.float32)          # (TM, D)
        lhs_ref[0:TM, :] = t_row
        lhs_ref[TM:2 * TM, :] = p_row
        lhs_sq_ref[0:TM, :] = jnp.sum(t_row * t_row, axis=-1, keepdims=True)
        lhs_sq_ref[TM:2 * TM, :] = jnp.sum(p_row * p_row, axis=-1, keepdims=True)

    t_col = tgt_colT_ref[0].astype(jnp.float32)          # (D, TN), lane-dense
    col_sq = col_sq_ref[0]                               # (1, TN), f32

    # One fused NN MXU matmul: [t_rows; p_rows] @ t_cols, no transposes.
    gram = jax.lax.dot_general(
        lhs_ref[...], t_col,
        dimension_numbers=(((1,), (0,)), ((), ())),
        preferred_element_type=jnp.float32)              # (2*TM, TN)

    sq = jnp.maximum(lhs_sq_ref[...] + col_sq - 2.0 * gram, 0.0)
    d = jnp.sqrt(sq)                                     # (2*TM, TN)
    abs_diff = jnp.abs(d[:TM, :] - d[TM:, :])            # (TM, TN)

    if mask_cols:
        # Zero the contributions of padded target columns (padded *rows* are
        # exactly zero already since pred and target are padded identically).
        col_ids = jax.lax.broadcasted_iota(jnp.int32, (TM, TN), 1)
        abs_diff = jnp.where(col_ids < (n_valid - j * TN), abs_diff, 0.0)

    # Lane-dense reduction into an (8, 128) slab with several independent
    # accumulators (breaks the serial vadd dependency chain); final cross-lane
    # reduce happens once in the JAX wrapper.
    n_r, n_c = TM // 8, TN // 128
    n_acc = min(8, n_r * n_c)
    accs = [jnp.zeros((8, 128), jnp.float32) for _ in range(n_acc)]
    k = 0
    for r in range(n_r):
        for c in range(n_c):
            a = k % n_acc
            accs[a] = accs[a] + abs_diff[r * 8:(r + 1) * 8, c * 128:(c + 1) * 128]
            k += 1
    while len(accs) > 1:
        nxt = [accs[t] + accs[t + 1] for t in range(0, len(accs) - 1, 2)]
        if len(accs) % 2:
            nxt.append(accs[-1])
        accs = nxt
    out_ref[...] += accs[0].reshape(1, 1, 8, 128)


def self_similarity_loss2(pred, target, weight=0.05):
    """Pallas implementation of SelfSimilarityLoss2.forward (p_norm=2)."""
    assert pred.shape == target.shape and pred.ndim == 3
    B, N, D = pred.shape

    # Tile caps: MXU/lane friendly, far inside VMEM on v5e/v6e/v7x; shrink for
    # very wide feature dims.
    tm_cap, tn_cap = (256, 512) if D <= 512 else (128, 256)
    TM = _pick_tile(N, cap=tm_cap, mult=8)
    TN = _pick_tile(N, cap=tn_cap, mult=128)
    n_pad_r = _round_up(N, TM)
    n_pad_c = _round_up(N, TN)

    # Row-side operands (zero-padded rows contribute exactly 0 to |d_t - d_p|).
    if n_pad_r != N:
        pad_r = [(0, 0), (0, n_pad_r - N), (0, 0)]
        pred_rows = jnp.pad(pred, pad_r)
        tgt_rows = jnp.pad(target, pad_r)
    else:
        pred_rows, tgt_rows = pred, target

    # Column-side operands: pre-transposed target (lane-dense columns) and the
    # hoisted column squared norms, both padded to a multiple of TN.
    tgt_t = jnp.swapaxes(target, 1, 2)                                    # (B, D, N)
    col_sq = jnp.sum(target.astype(jnp.float32) ** 2, axis=-1)[:, None, :]  # (B, 1, N)
    if n_pad_c != N:
        tgt_t = jnp.pad(tgt_t, [(0, 0), (0, 0), (0, n_pad_c - N)])
        col_sq = jnp.pad(col_sq, [(0, 0), (0, 0), (0, n_pad_c - N)])

    row_steps = n_pad_r // TM
    col_steps = n_pad_c // TN
    grid = (B, row_steps, col_steps)

    kernel = functools.partial(_selfsim_kernel, TM=TM, TN=TN, n_valid=N,
                               mask_cols=(n_pad_c != N))

    itemsize = jnp.dtype(pred.dtype).itemsize
    cost = pl.CostEstimate(
        flops=int(4 * B * n_pad_r * n_pad_c * D + 10 * B * n_pad_r * n_pad_c),
        transcendentals=int(2 * B * n_pad_r * n_pad_c),
        bytes_accessed=int(
            2 * B * n_pad_r * D * itemsize                    # pred + target rows (read once)
            + B * n_pad_c * D * itemsize * row_steps          # target columns re-read per row block
            + B * n_pad_c * 4 * row_steps                     # hoisted column norms
            + B * row_steps * 8 * 128 * 4),                   # partial-sum outputs
    )

    partials = pl.pallas_call(
        kernel,
        out_shape=jax.ShapeDtypeStruct((B, row_steps, 8, 128), jnp.float32),
        grid_spec=pltpu.PrefetchScalarGridSpec(
            num_scalar_prefetch=0,
            grid=grid,
            in_specs=[
                pl.BlockSpec((1, TM, D), lambda b, i, j: (b, i, 0)),   # pred rows
                pl.BlockSpec((1, TM, D), lambda b, i, j: (b, i, 0)),   # target rows
                pl.BlockSpec((1, D, TN), lambda b, i, j: (b, 0, j)),   # target cols (transposed)
                pl.BlockSpec((1, 1, TN), lambda b, i, j: (b, 0, j)),   # column squared norms
            ],
            out_specs=pl.BlockSpec((1, 1, 8, 128), lambda b, i, j: (b, i, 0, 0)),
            scratch_shapes=[
                pltpu.VMEM((2 * TM, D), jnp.float32),   # stacked [t_rows; p_rows]
                pltpu.VMEM((2 * TM, 1), jnp.float32),   # their squared norms
            ],
        ),
        compiler_params=pltpu.CompilerParams(
            dimension_semantics=("parallel", "parallel", "arbitrary"),
            vmem_limit_bytes=48 * 1024 * 1024,
        ),
        cost_estimate=cost,
    )(pred_rows, tgt_rows, tgt_t, col_sq)

    # Tiny final cross-lane reduce + l1_loss 'mean', / N, * weight in plain JAX.
    abs_sum = jnp.sum(partials)
    mean_abs = abs_sum / jnp.float32(B * N * N)
    return jnp.float32(weight) * mean_abs / jnp.float32(N)


def _reference(pred, target, weight=0.05):
    # Pure-JAX reference mirroring torch.cdist(p=2) + F.l1_loss('mean').
    def cdist(x, y):
        diff = x[:, :, None, :] - y[:, None, :, :]
        return jnp.sqrt(jnp.maximum(jnp.sum(diff * diff, axis=-1), 0.0))

    self_sim = cdist(target, target)
    dissim = cdist(pred, target)
    loss = jnp.mean(jnp.abs(self_sim - dissim)) / self_sim.shape[1]
    return weight * loss


if __name__ == "__main__":
    key = jax.random.PRNGKey(0)
    k1, k2, k3, k4 = jax.random.split(key, 4)

    # Small case (typical token/feature layout; exercises the padded-column
    # masking path: N=8 -> TM=8, TN=128 with 120 masked columns).
    B, N, D = 2, 8, 32
    pred = jax.random.normal(k1, (B, N, D), dtype=jnp.float32)
    target = jax.random.normal(k2, (B, N, D), dtype=jnp.float32)
    out = jax.block_until_ready(self_similarity_loss2(pred, target))
    ref = _reference(pred, target)
    assert jnp.allclose(out, ref, rtol=1e-3, atol=2e-6), (out, ref)

    # Larger case: exercises the multi-row-block tiled MXU path, the hoisted
    # row scratch, the multi-accumulator reduction and the per-(b,i) output
    # slabs (N=384 -> TM=192, TN=384, grid=(2, 2, 1), no padding).
    B2, N2, D2 = 2, 384, 64
    pred2 = jax.random.normal(k3, (B2, N2, D2), dtype=jnp.float32)
    target2 = jax.random.normal(k4, (B2, N2, D2), dtype=jnp.float32)
    out2 = jax.block_until_ready(self_similarity_loss2(pred2, target2))
    ref2 = _reference(pred2, target2)
    assert jnp.allclose(out2, ref2, rtol=1e-3, atol=2e-6), (out2, ref2)

    print("KERNEL_OK")
</pallas_src>

<mosaic_0001>
module attributes {stable_mosaic.version = 11 : i64} {
  func.func @_selfsim_kernel(%arg0: i32, %arg1: i32, %arg2: i32, %arg3: memref<1x8x32xf32, #tpu.memory_space<vmem>>, %arg4: memref<1x8x32xf32, #tpu.memory_space<vmem>>, %arg5: memref<1x32x128xf32, #tpu.memory_space<vmem>>, %arg6: memref<1x1x128xf32, #tpu.memory_space<vmem>>, %arg7: memref<1x1x8x128xf32, #tpu.memory_space<vmem>>, %arg8: memref<16x32xf32, #tpu.memory_space<vmem>>, %arg9: memref<16x1xf32, #tpu.memory_space<vmem>>) attributes {dimension_semantics = [#tpu.dimension_semantics<parallel>, #tpu.dimension_semantics<parallel>, #tpu.dimension_semantics<arbitrary>], iteration_bounds = array<i64: 2, 1, 1>, scalar_prefetch = 0 : i64, scratch_operands = 2 : i64, tpu.core_type = #tpu.core_type<tc>, window_params = [{transform_indices = @transform_0, window_bounds = array<i64: 1, 8, 32>}, {transform_indices = @transform_1, window_bounds = array<i64: 1, 8, 32>}, {transform_indices = @transform_2, window_bounds = array<i64: 1, 32, 128>}, {transform_indices = @transform_3, window_bounds = array<i64: 1, 1, 128>}, {transform_indices = @transform_4, window_bounds = array<i64: 1, 1, 8, 128>}]} {
    %c0_i32 = arith.constant 0 : i32
    %0 = arith.cmpi eq, %arg2, %c0_i32 : i32
    %1 = arith.extui %0 : i1 to i32
    %c0_i32_0 = arith.constant 0 : i32
    %2 = arith.cmpi ne, %1, %c0_i32_0 : i32
    scf.if %2 {
      %cst_22 = arith.constant 0.000000e+00 : f32
      %36 = vector.broadcast %cst_22 : f32 to vector<1x1x8x128xf32>
      %c0_23 = arith.constant 0 : index
      %c0_24 = arith.constant 0 : index
      %c0_25 = arith.constant 0 : index
      %c0_26 = arith.constant 0 : index
      %37 = vector.load %arg7[%c0_23, %c0_24, %c0_25, %c0_26] : memref<1x1x8x128xf32, #tpu.memory_space<vmem>>, vector<1x1x8x128xf32>
      tpu.vector_store %arg7[%c0_23, %c0_24, %c0_25, %c0_26], %36 {strides = array<i32>} : memref<1x1x8x128xf32, #tpu.memory_space<vmem>>, vector<1x1x8x128xf32>,
      %c0_27 = arith.constant 0 : index
      %c0_28 = arith.constant 0 : index
      %c0_29 = arith.constant 0 : index
      %38 = vector.load %arg4[%c0_27, %c0_28, %c0_29] : memref<1x8x32xf32, #tpu.memory_space<vmem>>, vector<1x8x32xf32>
      %39 = vector.shape_cast %38 : vector<1x8x32xf32> to vector<8x32xf32>
      %c0_30 = arith.constant 0 : index
      %c0_31 = arith.constant 0 : index
      %c0_32 = arith.constant 0 : index
      %40 = vector.load %arg3[%c0_30, %c0_31, %c0_32] : memref<1x8x32xf32, #tpu.memory_space<vmem>>, vector<1x8x32xf32>
      %41 = vector.shape_cast %40 : vector<1x8x32xf32> to vector<8x32xf32>
      %c0_33 = arith.constant 0 : index
      %c0_34 = arith.constant 0 : index
      %42 = vector.load %arg8[%c0_33, %c0_34] : memref<16x32xf32, #tpu.memory_space<vmem>>, vector<8x32xf32>
      tpu.vector_store %arg8[%c0_33, %c0_34], %39 {strides = array<i32>} : memref<16x32xf32, #tpu.memory_space<vmem>>, vector<8x32xf32>,
      %c8 = arith.constant 8 : index
      %c0_35 = arith.constant 0 : index
      %43 = vector.load %arg8[%c8, %c0_35] : memref<16x32xf32, #tpu.memory_space<vmem>>, vector<8x32xf32>
      tpu.vector_store %arg8[%c8, %c0_35], %41 {strides = array<i32>} : memref<16x32xf32, #tpu.memory_space<vmem>>, vector<8x32xf32>,
      %44 = arith.mulf %39, %39 : vector<8x32xf32>
      %cst_36 = arith.constant dense<0.000000e+00> : vector<8xf32>
      %45 = vector.multi_reduction <add>, %44, %cst_36 [1] : vector<8x32xf32> to vector<8xf32>
      %46 = vector.shape_cast %45 : vector<8xf32> to vector<8x1xf32>
      %c0_37 = arith.constant 0 : index
      %c0_38 = arith.constant 0 : index
      %47 = vector.load %arg9[%c0_37, %c0_38] : memref<16x1xf32, #tpu.memory_space<vmem>>, vector<8x1xf32>
      tpu.vector_store %arg9[%c0_37, %c0_38], %46 {strides = array<i32>} : memref<16x1xf32, #tpu.memory_space<vmem>>, vector<8x1xf32>,
      %48 = arith.mulf %41, %41 : vector<8x32xf32>
      %cst_39 = arith.constant dense<0.000000e+00> : vector<8xf32>
      %49 = vector.multi_reduction <add>, %48, %cst_39 [1] : vector<8x32xf32> to vector<8xf32>
      %50 = vector.shape_cast %49 : vector<8xf32> to vector<8x1xf32>
      %c8_40 = arith.constant 8 : index
      %c0_41 = arith.constant 0 : index
      %51 = vector.load %arg9[%c8_40, %c0_41] : memref<16x1xf32, #tpu.memory_space<vmem>>, vector<8x1xf32>
      tpu.vector_store %arg9[%c8_40, %c0_41], %50 {strides = array<i32>} : memref<16x1xf32, #tpu.memory_space<vmem>>, vector<8x1xf32>,
    } else {
    }
    %c0 = arith.constant 0 : index
    %c0_1 = arith.constant 0 : index
    %c0_2 = arith.constant 0 : index
    %3 = vector.load %arg5[%c0, %c0_1, %c0_2] : memref<1x32x128xf32, #tpu.memory_space<vmem>>, vector<1x32x128xf32>
    %4 = vector.shape_cast %3 : vector<1x32x128xf32> to vector<32x128xf32>
    %c0_3 = arith.constant 0 : index
    %c0_4 = arith.constant 0 : index
    %c0_5 = arith.constant 0 : index
    %5 = vector.load %arg6[%c0_3, %c0_4, %c0_5] : memref<1x1x128xf32, #tpu.memory_space<vmem>>, vector<1x1x128xf32>
    %6 = vector.shape_cast %5 : vector<1x1x128xf32> to vector<1x128xf32>
    %c0_6 = arith.constant 0 : index
    %c0_7 = arith.constant 0 : index
    %7 = vector.load %arg8[%c0_6, %c0_7] : memref<16x32xf32, #tpu.memory_space<vmem>>, vector<16x32xf32>
    %cst = arith.constant dense<0.000000e+00> : vector<16x128xf32>
    %8 = tpu.matmul %7, %4, %cst {dimension_numbers = #tpu.dot_dimension_numbers<[1], [0], [0], [1], [0, 0, 1, 1], [], []>} : vector<16x32xf32>, vector<32x128xf32>, vector<16x128xf32> -> vector<16x128xf32>
    %c0_8 = arith.constant 0 : index
    %c0_9 = arith.constant 0 : index
    %9 = vector.load %arg9[%c0_8, %c0_9] : memref<16x1xf32, #tpu.memory_space<vmem>>, vector<16x1xf32>
    %10 = vector.broadcast %9 : vector<16x1xf32> to vector<16x128xf32>
    %11 = vector.broadcast %6 : vector<1x128xf32> to vector<16x128xf32>
    %12 = arith.addf %10, %11 : vector<16x128xf32>
    %cst_10 = arith.constant 2.000000e+00 : f32
    %13 = vector.broadcast %cst_10 : f32 to vector<16x128xf32>
    %14 = arith.mulf %13, %8 : vector<16x128xf32>
    %15 = arith.subf %12, %14 : vector<16x128xf32>
    %cst_11 = arith.constant 0.000000e+00 : f32
    %16 = vector.broadcast %cst_11 : f32 to vector<16x128xf32>
    %17 = arith.maximumf %15, %16 : vector<16x128xf32>
    %18 = math.sqrt %17 : vector<16x128xf32>
    %19 = vector.extract_strided_slice %18 {offsets = [0, 0], sizes = [8, 128], strides = [1, 1]} : vector<16x128xf32> to vector<8x128xf32>
    %20 = vector.extract_strided_slice %18 {offsets = [8, 0], sizes = [8, 128], strides = [1, 1]} : vector<16x128xf32> to vector<8x128xf32>
    %21 = arith.subf %19, %20 : vector<8x128xf32>
    %22 = math.absf %21 : vector<8x128xf32>
    %23 = tpu.iota {dimensions = array<i32: 1>} : vector<8x128xi32>
    %c128_i32 = arith.constant 128 : i32
    %24 = arith.muli %arg2, %c128_i32 : i32
    %c8_i32 = arith.constant 8 : i32
    %25 = arith.subi %c8_i32, %24 : i32
    %26 = vector.broadcast %25 : i32 to vector<8x128xi32>
    %27 = arith.cmpi slt, %23, %26 : vector<8x128xi32>
    %cst_12 = arith.constant 0.000000e+00 : f32
    %28 = vector.broadcast %cst_12 : f32 to vector<8x128xf32>
    %29 = arith.select %27, %22, %28 : vector<8x128xi1>, vector<8x128xf32>
    %cst_13 = arith.constant 0.000000e+00 : f32
    %30 = vector.broadcast %cst_13 : f32 to vector<8x128xf32>
    %31 = arith.addf %30, %29 : vector<8x128xf32>
    %c0_14 = arith.constant 0 : index
    %c0_15 = arith.constant 0 : index
    %c0_16 = arith.constant 0 : index
    %c0_17 = arith.constant 0 : index
    %32 = vector.load %arg7[%c0_14, %c0_15, %c0_16, %c0_17] : memref<1x1x8x128xf32, #tpu.memory_space<vmem>>, vector<1x1x8x128xf32>
    %33 = vector.shape_cast %31 : vector<8x128xf32> to vector<1x1x8x128xf32>
    %34 = arith.addf %32, %33 : vector<1x1x8x128xf32>
    %c0_18 = arith.constant 0 : index
    %c0_19 = arith.constant 0 : index
    %c0_20 = arith.constant 0 : index
    %c0_21 = arith.constant 0 : index
    %35 = vector.load %arg7[%c0_18, %c0_19, %c0_20, %c0_21] : memref<1x1x8x128xf32, #tpu.memory_space<vmem>>, vector<1x1x8x128xf32>
    tpu.vector_store %arg7[%c0_18, %c0_19, %c0_20, %c0_21], %34 {strides = array<i32>} : memref<1x1x8x128xf32, #tpu.memory_space<vmem>>, vector<1x1x8x128xf32>,
    return
  }
  func.func @transform_0(%arg0: i32, %arg1: i32, %arg2: i32) -> (i32, i32, i32) {
    %c0_i32 = arith.constant 0 : i32
    %c0_i32_0 = arith.constant 0 : i32
    return %arg0, %arg1, %c0_i32 : i32, i32, i32
  }
  func.func @transform_1(%arg0: i32, %arg1: i32, %arg2: i32) -> (i32, i32, i32) {
    %c0_i32 = arith.constant 0 : i32
    %c0_i32_0 = arith.constant 0 : i32
    return %arg0, %arg1, %c0_i32 : i32, i32, i32
  }
  func.func @transform_2(%arg0: i32, %arg1: i32, %arg2: i32) -> (i32, i32, i32) {
    %c0_i32 = arith.constant 0 : i32
    %c0_i32_0 = arith.constant 0 : i32
    return %arg0, %c0_i32, %arg2 : i32, i32, i32
  }
  func.func @transform_3(%arg0: i32, %arg1: i32, %arg2: i32) -> (i32, i32, i32) {
    %c0_i32 = arith.constant 0 : i32
    %c0_i32_0 = arith.constant 0 : i32
    return %arg0, %c0_i32, %arg2 : i32, i32, i32
  }
  func.func @transform_4(%arg0: i32, %arg1: i32, %arg2: i32) -> (i32, i32, i32, i32) {
    %c0_i32 = arith.constant 0 : i32
    %c0_i32_0 = arith.constant 0 : i32
    %c0_i32_1 = arith.constant 0 : i32
    return %arg0, %arg1, %c0_i32, %c0_i32_0 : i32, i32, i32, i32
  }
}

</mosaic_0001>

<llo_original>
// kernel: tpu_custom_call.1
$region0: #{tpu_custom_call.1}
  #allocation0 [shape = 'u32[]', space=smem, size = 0x4, offset = 0x4, fixed_abs, tag = 'smem constant byte address 0x4 - core index']
  #allocation1 [shape = 'u32[144,128]{1,0:T(1,128)}', space=vmem, size = 0x12000, scoped, tag = 'internal scratch']
  #allocation2 [shape = 'f32[16,32]{1,0:T(8,128)}', space=vmem, size = 0x2000, scoped, tag = 'scratch operand']
  #allocation3 [shape = 'f32[16,1]{1,0:T(8,128)}', space=vmem, size = 0x2000, scoped, tag = 'scratch operand']
  %s0 = inlined_call_operand.hbm [shape: f32[2,8,32], index: 0, kind: input, shape index: {}]
  %s1 = inlined_call_operand.hbm [shape: f32[2,8,32], index: 1, kind: input, shape index: {}]
  %s2 = inlined_call_operand.hbm [shape: f32[2,32,128], index: 2, kind: input, shape index: {}]
  %s3 = inlined_call_operand.vmem [shape: f32[2,1,128], index: 3, kind: input, shape index: {}]
  %s4 = inlined_call_operand.hbm [shape: f32[2,1,8,128], index: 4, kind: output, shape index: {}]
  %s5 = sld [smem:[#allocation0]]
  $region65: #{tpu_custom_call.1} parent=0
    _
  %s7 = ssub.s32 1, %s5
  %s8 = scalar_select 0, %s7, %s5
  $region1: #{tpu_custom_call.1} parent=0
    #allocation4 [shape = 'u8[8192]{0}', space=vmem, size = 0x2000, scoped, tag = 'input window, operand 0']
    #allocation5 [shape = 's32[2]{0}', space=sflag, size = 0x8, scoped, tag = 'scoped memory for tpu_custom_call.1']
    #allocation6 [shape = 's32[2]{0}', space=sflag, size = 0x8, scoped, tag = 'scoped memory for tpu_custom_call.1']
    #allocation7 [shape = 'u8[8192]{0}', space=vmem, size = 0x2000, scoped, tag = 'input window, operand 1']
    #allocation8 [shape = 's32[2]{0}', space=sflag, size = 0x8, scoped, tag = 'scoped memory for tpu_custom_call.1']
    #allocation9 [shape = 'u8[32768]{0}', space=vmem, size = 0x8000, scoped, tag = 'input window, operand 2']
    #allocation10 [shape = 'u8[8192]{0}', space=vmem, size = 0x2000, scoped, tag = 'output window, operand 0']
    %9 = vsyncpa [#allocation5], 0
    %s10 = scalar_lea.sflag [#allocation5], 1
    %11 = vsyncpa %s10, 0
    %12 = vsyncpa [#allocation8], 0
    %s13 = scalar_lea.sflag [#allocation8], 1
    %14 = vsyncpa %s13, 0
    %15 = vsyncpa [#allocation6], 0
    %s16 = scalar_lea.sflag [#allocation6], 1
    %17 = vsyncpa %s16, 0
    loop: start=0, step=1, limit=4
    $region2: #{tpu_custom_call.1} parent=1 // loop_pre_header
      _
    $region3: #{tpu_custom_call.1} parent=1 // loop_header
      %s19 = sphi 0, %s23
      %p20 = scmp.ge.s32.totalorder %s19, 4
      %s26 = sphi 0, %s45
      %s27 = sphi 0, %s41
      %s28 = sphi 0, %s37
      %s29 = sphi 0, %s26
      %s30 = sphi 0, %s27
      %s31 = sphi 0, %s28
      %s32 = sphi 0, %s29
      %s33 = sphi 0, %s30
      %s34 = sphi 0, %s31
      %s50 = sphi 0, %s52
      %s53 = sphi 0, %s50
      %s54 = sphi 0, %s53
      %s70 = sphi 0, %s54
      %s78 = sphi 0, %s80
      %s81 = sphi 0, %s78
      %s82 = sphi 0, %s81
      %s98 = sphi 0, %s82
      %s106 = sphi 0, %s108
      %s109 = sphi 0, %s106
      %s110 = sphi 0, %s109
      %s126 = sphi 0, %s110
      %s134 = sphi 0, %s136
      %s137 = sphi 0, %s134
      %s138 = sphi 0, %s137
      %s154 = sphi 0, %s138
      %s162 = sphi 0, %s164
      %s165 = sphi 0, %s162
      %s166 = sphi 0, %s165
      %s182 = sphi 0, %s166
    $region4: #{tpu_custom_call.1} parent=1 // loop_header_branch
      %22 = sbr.rel (%p20) target = $region8
    $region5: #{tpu_custom_call.1} parent=1 // loop_body
      %s24 = ssub.s32 %s19, 1
      %s25 = ssub.s32 %s19, 2
      %s35 = sadd.s32 1, %s28
      %p36 = scmp.ge.s32.totalorder %s35, 1
      %s37 = scalar_select %p36, 0, %s35
      %s38 = sadd.s32 1, %s27
      %s39 = scalar_select %p36, %s38, %s27
      %p40 = scmp.ge.s32.totalorder %s39, 1
      %s41 = scalar_select %p40, 0, %s39
      %s42 = sadd.s32 1, %s26
      %s43 = scalar_select %p40, %s42, %s26
      %p44 = scmp.ge.s32.totalorder %s43, 2
      %s45 = scalar_select %p44, 0, %s43
      %s46 = ssub.s32 %s26, %s45
      %s47 = ssub.s32 %s27, %s41
      %s48 = sor.u32 %s46, %s47
      %p49 = scmp.eq.s32.totalorder %s48, 0
      %s51 = sadd.s32 %s50, 1
      %s52 = scalar_select %p49, %s50, %s51
      %p55 = pneg %p49
      %p56 = scmp.eq.s32.totalorder %s19, 1
      %p57 = por %p55, %p56
      %p58 = scmp.ne.s32.totalorder %s50, %s53
      %p59 = scmp.eq.s32.totalorder %s19, 0
      %p60 = por %p58, %p59
      %p61 = scmp.ne.s32.totalorder %s50, %s53
      %p62 = scmp.eq.s32.totalorder %s24, 1
      %p63 = por %p61, %p62
      %p64 = scmp.ne.s32.totalorder %s53, %s54
      %p65 = scmp.eq.s32.totalorder %s24, 0
      %p66 = por %p64, %p65
      %p67 = scmp.ne.s32.totalorder %s53, %s54
      %p68 = scmp.eq.s32.totalorder %s25, 1
      %p69 = por %p67, %p68
      %p71 = scmp.ne.s32.totalorder %s54, %s70
      %p72 = scmp.eq.s32.totalorder %s25, 0
      %p73 = por %p71, %p72
      %s74 = ssub.s32 %s26, %s45
      %s75 = ssub.s32 %s27, %s41
      %s76 = sor.u32 %s74, %s75
      %p77 = scmp.eq.s32.totalorder %s76, 0
      %s79 = sadd.s32 %s78, 1
      %s80 = scalar_select %p77, %s78, %s79
      %p83 = pneg %p77
      %p84 = scmp.eq.s32.totalorder %s19, 1
      %p85 = por %p83, %p84
      %p86 = scmp.ne.s32.totalorder %s78, %s81
      %p87 = scmp.eq.s32.totalorder %s19, 0
      %p88 = por %p86, %p87
      %p89 = scmp.ne.s32.totalorder %s78, %s81
      %p90 = scmp.eq.s32.totalorder %s24, 1
      %p91 = por %p89, %p90
      %p92 = scmp.ne.s32.totalorder %s81, %s82
      %p93 = scmp.eq.s32.totalorder %s24, 0
      %p94 = por %p92, %p93
      %p95 = scmp.ne.s32.totalorder %s81, %s82
      %p96 = scmp.eq.s32.totalorder %s25, 1
      %p97 = por %p95, %p96
      %p99 = scmp.ne.s32.totalorder %s82, %s98
      %p100 = scmp.eq.s32.totalorder %s25, 0
      %p101 = por %p99, %p100
      %s102 = ssub.s32 %s26, %s45
      %s103 = ssub.s32 %s28, %s37
      %s104 = sor.u32 %s102, %s103
      %p105 = scmp.eq.s32.totalorder %s104, 0
      %s107 = sadd.s32 %s106, 1
      %s108 = scalar_select %p105, %s106, %s107
      %p111 = pneg %p105
      %p112 = scmp.eq.s32.totalorder %s19, 1
      %p113 = por %p111, %p112
      %p114 = scmp.ne.s32.totalorder %s106, %s109
      %p115 = scmp.eq.s32.totalorder %s19, 0
      %p116 = por %p114, %p115
      %p117 = scmp.ne.s32.totalorder %s106, %s109
      %p118 = scmp.eq.s32.totalorder %s24, 1
      %p119 = por %p117, %p118
      %p120 = scmp.ne.s32.totalorder %s109, %s110
      %p121 = scmp.eq.s32.totalorder %s24, 0
      %p122 = por %p120, %p121
      %p123 = scmp.ne.s32.totalorder %s109, %s110
      %p124 = scmp.eq.s32.totalorder %s25, 1
      %p125 = por %p123, %p124
      %p127 = scmp.ne.s32.totalorder %s110, %s126
      %p128 = scmp.eq.s32.totalorder %s25, 0
      %p129 = por %p127, %p128
      %s130 = ssub.s32 %s26, %s45
      %s131 = ssub.s32 %s28, %s37
      %s132 = sor.u32 %s130, %s131
      %p133 = scmp.eq.s32.totalorder %s132, 0
      %s135 = sadd.s32 %s134, 1
      %s136 = scalar_select %p133, %s134, %s135
      %p139 = pneg %p133
      %p140 = scmp.eq.s32.totalorder %s19, 1
      %p141 = por %p139, %p140
      %p142 = scmp.ne.s32.totalorder %s134, %s137
      %p143 = scmp.eq.s32.totalorder %s19, 0
      %p144 = por %p142, %p143
      %p145 = scmp.ne.s32.totalorder %s134, %s137
      %p146 = scmp.eq.s32.totalorder %s24, 1
      %p147 = por %p145, %p146
      %p148 = scmp.ne.s32.totalorder %s137, %s138
      %p149 = scmp.eq.s32.totalorder %s24, 0
      %p150 = por %p148, %p149
      %p151 = scmp.ne.s32.totalorder %s137, %s138
      %p152 = scmp.eq.s32.totalorder %s25, 1
      %p153 = por %p151, %p152
      %p155 = scmp.ne.s32.totalorder %s138, %s154
      %p156 = scmp.eq.s32.totalorder %s25, 0
      %p157 = por %p155, %p156
      %s158 = ssub.s32 %s26, %s45
      %s159 = ssub.s32 %s27, %s41
      %s160 = sor.u32 %s158, %s159
      %p161 = scmp.eq.s32.totalorder %s160, 0
      %s163 = sadd.s32 %s162, 1
      %s164 = scalar_select %p161, %s162, %s163
      %p167 = pneg %p161
      %p168 = scmp.eq.s32.totalorder %s19, 1
      %p169 = por %p167, %p168
      %p170 = scmp.ne.s32.totalorder %s162, %s165
      %p171 = scmp.eq.s32.totalorder %s19, 0
      %p172 = por %p170, %p171
      %p173 = scmp.ne.s32.totalorder %s162, %s165
      %p174 = scmp.eq.s32.totalorder %s24, 1
      %p175 = por %p173, %p174
      %p176 = scmp.ne.s32.totalorder %s165, %s166
      %p177 = scmp.eq.s32.totalorder %s24, 0
      %p178 = por %p176, %p177
      %p179 = scmp.ne.s32.totalorder %s165, %s166
      %p180 = scmp.eq.s32.totalorder %s25, 1
      %p181 = por %p179, %p180
      %p183 = scmp.ne.s32.totalorder %s166, %s182
      %p184 = scmp.eq.s32.totalorder %s25, 0
      %p185 = por %p183, %p184
      %p186 = scmp.le.s32.totalorder 1, %s19
      %p187 = scmp.lt.s32.totalorder %s19, 3
      %p188 = pnand %p186, %p187
      %p189 = pneg %p188
      // Predicated region
      $region9: #{tpu_custom_call.1} parent=5 // pred_check
        _
      $region10: #{tpu_custom_call.1} parent=5 // pred_check_branch
        %191 = sbr.rel (%p188) target = $region12
      $region11: #{tpu_custom_call.1} parent=5 // pred_region
        %s192 = ssub.s32 %s19, 1
      $region12: #{tpu_custom_call.1} parent=5 // pred_fallthru
        _
      %p193 = scmp.lt.s32.totalorder %s19, 2
      // Predicated region
      $region13: #{tpu_custom_call.1} parent=5 // pred_check
        %p194 = pneg %p193
      $region14: #{tpu_custom_call.1} parent=5 // pred_check_branch
        %196 = sbr.rel (%p194) target = $region16
      $region15: #{tpu_custom_call.1} parent=5 // pred_region
        // Predicated region
        $region17: #{tpu_custom_call.1} parent=15 // pred_check
          %p197 = pneg %p60
        $region18: #{tpu_custom_call.1} parent=15 // pred_check_branch
          %199 = sbr.rel (%p197) target = $region20
        $region19: #{tpu_custom_call.1} parent=15 // pred_region
          %s200 = sand.u32 %s50, 1
          %s201 = scalar_lea.sflag [#allocation5], %s200
          %s202 = sand.u32 %s50, 1
          %s203 = smul.addr %s202, 8
          %s204 = scalar_lea.vmem [#allocation4], %s203
          %s206 = ssub.s32 128, 128
          %207 = vsyncadd %s201, %s206
          %s208 = sadd.s32 %s27, %s26
          %s209 = smul.addr %s208, 128
          %s210 = scalar_lea.hbm %s0, %s209
          %s212 = sshll.u32 %s204, 4
          %s213 = int_to_ptr.vmem [resolvable:$true] %s212
          %215 = dma.hbm_to_vmem [thread:$0]  %s210, 128, %s213, %s201
        $region20: #{tpu_custom_call.1} parent=15 // pred_fallthru
          _
        // Predicated region
        $region21: #{tpu_custom_call.1} parent=15 // pred_check
          %p216 = pneg %p88
        $region22: #{tpu_custom_call.1} parent=15 // pred_check_branch
          %218 = sbr.rel (%p216) target = $region24
        $region23: #{tpu_custom_call.1} parent=15 // pred_region
          %s219 = sand.u32 %s19, 1
          %s220 = scalar_lea.sflag [#allocation8], %s219
          %s221 = sand.u32 %s78, 1
          %s222 = smul.addr %s221, 8
          %s223 = scalar_lea.vmem [#allocation7], %s222
          %s225 = ssub.s32 128, 128
          %226 = vsyncadd %s220, %s225
          %s227 = sadd.s32 %s27, %s26
          %s228 = smul.addr %s227, 128
          %s229 = scalar_lea.hbm %s1, %s228
          %s231 = sshll.u32 %s223, 4
          %s232 = int_to_ptr.vmem [resolvable:$true] %s231
          %234 = dma.hbm_to_vmem [thread:$0]  %s229, 128, %s232, %s220
        $region24: #{tpu_custom_call.1} parent=15 // pred_fallthru
          _
        // Predicated region
        $region25: #{tpu_custom_call.1} parent=15 // pred_check
          %p235 = pneg %p116
        $region26: #{tpu_custom_call.1} parent=15 // pred_check_branch
          %237 = sbr.rel (%p235) target = $region28
        $region27: #{tpu_custom_call.1} parent=15 // pred_region
          %s238 = sand.u32 %s19, 1
          %s239 = scalar_lea.sflag [#allocation8], %s238
          %s240 = sand.u32 %s106, 1
          %s241 = smul.addr %s240, 32
          %s242 = scalar_lea.vmem [#allocation9], %s241
          %s244 = ssub.s32 512, 512
          %245 = vsyncadd %s239, %s244
          %s246 = smul.addr %s26, 4
          %s247 = sadd.s32 %s28, %s246
          %s248 = smul.addr %s247, 128
          %s249 = scalar_lea.hbm %s2, %s248
          %s250 = sshll.u32 %s242, 4
          %s251 = int_to_ptr.vmem [resolvable:$true] %s250
          %256 = dma.hbm_to_vmem [thread:$0]  %s249, 512, %s251, %s239, 128, 128, 8
        $region28: #{tpu_custom_call.1} parent=15 // pred_fallthru
          _
        // Predicated region
        $region29: #{tpu_custom_call.1} parent=15 // pred_check
          %p257 = pneg %p144
        $region30: #{tpu_custom_call.1} parent=15 // pred_check_branch
          %259 = sbr.rel (%p257) target = $region32
        $region31: #{tpu_custom_call.1} parent=15 // pred_region
          %p260 = scmp.lt.s32.totalorder %s26, 1
          %s261 = scalar_select %p260, %s26, 1
          %p262 = scmp.lt.s32.totalorder %s28, 0
          %s263 = scalar_select %p262, %s28, 0
          %s264 = sadd.s32 %s263, %s261
          %s265 = scalar_lea.vmem %s3, %s264
        $region32: #{tpu_custom_call.1} parent=15 // pred_fallthru
          _
      $region16: #{tpu_custom_call.1} parent=5 // pred_fallthru
        _
      %p266 = scmp.le.s32.totalorder 1, %s19
      %p267 = scmp.lt.s32.totalorder %s19, 3
      %p268 = pnand %p266, %p267
      %p269 = pneg %p268
      // Predicated region
      $region33: #{tpu_custom_call.1} parent=5 // pred_check
        _
      $region34: #{tpu_custom_call.1} parent=5 // pred_check_branch
        %271 = sbr.rel (%p268) target = $region36
      $region35: #{tpu_custom_call.1} parent=5 // pred_region
        %s272 = ssub.s32 %s19, 1
        %s273 = sand.u32 %s53, 1
        %s274 = scalar_lea.sflag [#allocation5], %s273
        %s275 = sand.u32 %s53, 1
        %s276 = smul.addr %s275, 8
        %s277 = scalar_lea.vmem [#allocation4], %s276
        // Predicated region
        $region37: #{tpu_custom_call.1} parent=35 // pred_check
          %p278 = pneg %p66
        $region38: #{tpu_custom_call.1} parent=35 // pred_check_branch
          %280 = sbr.rel (%p278) target = $region40
        $region39: #{tpu_custom_call.1} parent=35 // pred_region
          %281 = dma.done %s274, 128
        $region40: #{tpu_custom_call.1} parent=35 // pred_fallthru
          _
        %s282 = sand.u32 %s24, 1
        %s283 = scalar_lea.sflag [#allocation8], %s282
        %s284 = sand.u32 %s81, 1
        %s285 = smul.addr %s284, 8
        %s286 = scalar_lea.vmem [#allocation7], %s285
        // Predicated region
        $region41: #{tpu_custom_call.1} parent=35 // pred_check
          %p287 = pneg %p94
        $region42: #{tpu_custom_call.1} parent=35 // pred_check_branch
          %289 = sbr.rel (%p287) target = $region44
        $region43: #{tpu_custom_call.1} parent=35 // pred_region
          %290 = dma.done %s283, 128
        $region44: #{tpu_custom_call.1} parent=35 // pred_fallthru
          _
        %s291 = sand.u32 %s24, 1
        %s292 = scalar_lea.sflag [#allocation8], %s291
        %s293 = sand.u32 %s109, 1
        %s294 = smul.addr %s293, 32
        %s295 = scalar_lea.vmem [#allocation9], %s294
        // Predicated region
        $region45: #{tpu_custom_call.1} parent=35 // pred_check
          %p296 = pneg %p122
        $region46: #{tpu_custom_call.1} parent=35 // pred_check_branch
          %298 = sbr.rel (%p296) target = $region48
        $region47: #{tpu_custom_call.1} parent=35 // pred_region
          %299 = dma.done %s292, 512
        $region48: #{tpu_custom_call.1} parent=35 // pred_fallthru
          _
        %s300 = sand.u32 %s53, 1
        %s301 = scalar_lea.sflag [#allocation5], %s300
        %s302 = sand.u32 %s53, 1
        %s303 = smul.addr %s302, 8
        %s304 = scalar_lea.vmem [#allocation4], %s303
        %p305 = pneg %p66
        %p306 = pneg %p63
        %s307 = sand.u32 %s24, 1
        %s308 = scalar_lea.sflag [#allocation8], %s307
        %s309 = sand.u32 %s81, 1
        %s310 = smul.addr %s309, 8
        %s311 = scalar_lea.vmem [#allocation7], %s310
        %p312 = pneg %p94
        %p313 = pneg %p91
        %s314 = sand.u32 %s24, 1
        %s315 = scalar_lea.sflag [#allocation8], %s314
        %s316 = sand.u32 %s109, 1
        %s317 = smul.addr %s316, 32
        %s318 = scalar_lea.vmem [#allocation9], %s317
        %p319 = pneg %p122
        %p320 = pneg %p119
        %p321 = scmp.lt.s32.totalorder %s29, 1
        %s322 = scalar_select %p321, %s29, 1
        %p323 = scmp.lt.s32.totalorder %s31, 0
        %s324 = scalar_select %p323, %s31, 0
        %s325 = sadd.s32 %s324, %s322
        %s326 = scalar_lea.vmem %s3, %s325
        %p327 = pneg %p150
        %p328 = pneg %p147
        %p329 = pneg %p178
        %p330 = pneg %p175
        %s331 = sand.u32 %s165, 1
        %s332 = scalar_lea.sflag [#allocation6], %s331
        %s333 = sand.u32 %s165, 1
        %s334 = smul.addr %s333, 8
        %s335 = scalar_lea.vmem [#allocation10], %s334
        %p336 = scmp.lt.s32.totalorder %s29, 1
        %s337 = scalar_select %p336, %s29, 1
        %p338 = scmp.lt.s32.totalorder %s31, 0
        %s339 = scalar_select %p338, %s31, 0
        %s340 = sadd.s32 %s339, %s337
        %s341 = scalar_lea.vmem %s3, %s340
        %p342 = scmp.eq.s32.totalorder %s31, 0
        // Predicated region
        $region49: #{tpu_custom_call.1} parent=35 // pred_check
          %p343 = pneg %p342
        $region50: #{tpu_custom_call.1} parent=35 // pred_check_branch
          %345 = sbr.rel (%p343) target = $region52
        $region51: #{tpu_custom_call.1} parent=35 // pred_region
          %346 = vst [vmem:[%s335] sm:$0xff] 0.0
          %v347 = vld [vmem:[%s286] sm:$0xff]
          %v348 = vld [vmem:[%s277] sm:$0xff]
          %vm349 = vcmask 261120
          %350 = vst.msk [vmem:[#allocation2] sm:$0xff] %vm349, %v347
          %351 = vst.msk [vmem:[#allocation2 + $0x8] sm:$0xff] %vm349, %v348
          %v352 = vmul.f32 %v347, %v347
          %v353 = vsel %vm349, %v352, 0.0
          %354 = vadd.xlane.f32.xlu0 %v353
          %v355 = vpop.xlane.xlu0 %354
          %vm356 = vcmask 7168
          %357 = vst.msk [vmem:[#allocation3] sm:$0xff] %vm356, %v355
          %v358 = vmul.f32 %v348, %v348
          %v359 = vsel %vm349, %v358, 0.0
          %360 = vadd.xlane.f32.xlu0 %v359
          %v361 = vpop.xlane.xlu0 %360
          %362 = vst.msk [vmem:[#allocation3 + $0x8] sm:$0xff] %vm356, %v361
        $region52: #{tpu_custom_call.1} parent=35 // pred_fallthru
          _
        %v363 = vld [vmem:[%s295] sm:$0xff]
        %v364 = vld [vmem:[%s295 + $0x8] sm:$0xff]
        %v365 = vld [vmem:[%s295 + $0x10] sm:$0xff]
        %v366 = vld [vmem:[%s295 + $0x18] sm:$0xff]
        %v367 = vld [vmem:[%s341] sm:$0x1]
        %v368 = vld [vmem:[#allocation2] sm:$0xff]
        %v369 = vld [vmem:[#allocation2 + $0x8] sm:$0xff]
        %vm370 = vcmask 261120
        %v372 = vsel %vm370, %v368, 0
        %v375 = vsel %vm370, %v369, 0
        %377 = vmatprep.subr.mxu0 0.0
        %378 = vmatpush1.msra.mxu0 %v363
        %379 = vmatprep.subr.mxu0 0.0
        %380 = vmatpush1.msra.mxu0 %v364
        %381 = vmatprep.subr.mxu0 0.0
        %382 = vmatpush1.msra.mxu0 %v365
        %383 = vmatprep.subr.mxu0 0.0
        %384 = vmatpush1.msra.mxu0 %v366
        %385 = vmatprep.subr.mxu0 0.0
        %386 = vmatpush1.msra.mxu0 0.0
        %387 = vmatprep.subr.mxu0 0.0
        %388 = vmatpush1.msra.mxu0 0.0
        %389 = vmatprep.subr.mxu0 0.0
        %390 = vmatpush1.msra.mxu0 0.0
        %391 = vmatprep.subr.mxu0 0.0
        %392 = vmatpush1.msra.mxu0 0.0
        %393 = vmatprep.subr.mxu0 0.0
        %394 = vmatpush1.msra.mxu0 0.0
        %395 = vmatprep.subr.mxu0 0.0
        %396 = vmatpush1.msra.mxu0 0.0
        %397 = vmatprep.subr.mxu0 0.0
        %398 = vmatpush1.msra.mxu0 0.0
        %399 = vmatprep.subr.mxu0 0.0
        %400 = vmatpush1.msra.mxu0 0.0
        %401 = vmatprep.subr.mxu0 0.0
        %402 = vmatpush1.msra.mxu0 0.0
        %403 = vmatprep.subr.mxu0 0.0
        %404 = vmatpush1.msra.mxu0 0.0
        %405 = vmatprep.subr.mxu0 0.0
        %406 = vmatpush1.msra.mxu0 0.0
        %407 = vmatprep.subr.mxu0 0.0
        %408 = vmatpush1.msra.mxu0 0.0
        %409 = vmatprep.subr.mxu0 0.0
        %410 = vmatpush1.msra.mxu0 0.0
        %411 = vmatprep.subr.mxu0 0.0
        %412 = vmatpush1.msra.mxu0 0.0
        %413 = vmatprep.subr.mxu0 0.0
        %414 = vmatpush1.msra.mxu0 0.0
        %415 = vmatprep.subr.mxu0 0.0
        %416 = vmatpush1.msra.mxu0 0.0
        %417 = vmatprep.subr.mxu0 0.0
        %418 = vmatpush1.msra.mxu0 0.0
        %419 = vmatprep.subr.mxu0 0.0
        %420 = vmatpush1.msra.mxu0 0.0
        %421 = vmatprep.subr.mxu0 0.0
        %422 = vmatpush1.msra.mxu0 0.0
        %423 = vmatprep.subr.mxu0 0.0
        %424 = vmatpush1.msra.mxu0 0.0
        %425 = vmatprep.subr.mxu0 0.0
        %426 = vmatpush1.msra.mxu0 0.0
        %427 = vmatprep.subr.mxu0 0.0
        %428 = vmatpush1.msra.mxu0 0.0
        %429 = vmatprep.subr.mxu0 0.0
        %430 = vmatpush1.msra.mxu0 0.0
        %431 = vmatprep.subr.mxu0 0.0
        %432 = vmatpush1.msra.mxu0 0.0
        %433 = vmatprep.subr.mxu0 0.0
        %434 = vmatpush1.msra.mxu0 0.0
        %435 = vmatprep.subr.mxu0 0.0
        %436 = vmatpush1.msra.mxu0 0.0
        %437 = vmatprep.subr.mxu0 0.0
        %438 = vmatpush1.msra.mxu0 0.0
        %439 = vmatprep.subr.mxu0 0.0
        %440 = vmatpush1.msra.mxu0 0.0
        %441 = vmatprep.mubr.f32.mxu0 0.0
        %442 = vmatmul.mubr.f32.gmra.mrb[0].mxu0 %v372
        %v443 = vpop.f32.mrb[0].mxu0
        %v444 = vadd.f32 0.0, %v443
        %v445 = vpop.f32.mrb[0].mxu0
        %446 = vmatprep.mubr.f32.mxu0 0.0
        %447 = vmatmul.mubr.f32.gmra.mrb[0].mxu0 %v375
        %v448 = vpop.f32.mrb[0].mxu0
        %v449 = vadd.f32 0.0, %v448
        %v450 = vpop.f32.mrb[0].mxu0
        %451 = vdwg.mxu0
        %v452 = vld [vmem:[#allocation3] sm:$0xff]
        %v453 = vld [vmem:[#allocation3 + $0x8] sm:$0xff]
        %455 = vset.pattern.permute.xlu0 0
        %456 = vperm.xlu0 %455, %v452
        %v457 = vpop.permute.xlu0 %456
        %460 = vset.pattern.permute.xlu0 0
        %461 = vperm.xlu0 %460, %v453
        %v462 = vpop.permute.xlu0 %461
        %v465 = vlaneseq
        %v466 = vshrl.u32 %v465, 7
        %v467 = vsub.s32 0, %v466
        %v468 = vrot.slane %v367, %v467
        %v470 = vadd.f32 %v457, %v468
        %v471 = vadd.f32 %v462, %v468
        %v472 = vmul.f32 %v444, 2.0
        %v473 = vmul.f32 %v449, 2.0
        %v474 = vsub.f32 %v470, %v472
        %v475 = vsub.f32 %v471, %v473
        %v476 = vmax.f32 %v474, 0.0
        %v477 = vmax.f32 %v475, 0.0
        %v478 = vrsqrt.pop %v476
        %v479 = vmul.f32 %v476, %v478
        %vm480 = vcmp.eq.f32.partialorder %v476, inf
        %v481 = vsel %vm480, %v476, %v479
        %vm482 = vcmp.eq.f32.partialorder %v476, 0.0
        %v483 = vand.u32 %v476, 2147483648
        %v484 = vsel %vm482, %v483, %v481
        %v485 = vrsqrt.pop %v477
        %v486 = vmul.f32 %v477, %v485
        %vm487 = vcmp.eq.f32.partialorder %v477, inf
        %v488 = vsel %vm487, %v477, %v486
        %vm489 = vcmp.eq.f32.partialorder %v477, 0.0
        %v490 = vand.u32 %v477, 2147483648
        %v491 = vsel %vm489, %v490, %v488
        %v492 = vsub.f32 %v484, %v491
        %v493 = vand.u32 2147483647, %v492
        %v494 = vlaneseq
        %v495 = vand.u32 %v494, 127
        %s496 = smul.u32 %s31, 128
        %s497 = ssub.s32 8, %s496
        %v498 = vstv %s497
        %vm499 = vcmp.lt.s32.totalorder %v495, %v498
        %v500 = vsel %vm499, %v493, 0.0
        %v501 = vadd.f32 %v500, 0.0
        %v502 = vld [vmem:[%s335] sm:$0xff]
        %v503 = vadd.f32 %v502, %v501
        %504 = vst [vmem:[%s335] sm:$0xff] %v503
        %s505 = sand.u32 %s165, 1
        %s506 = scalar_lea.sflag [#allocation6], %s505
        %s507 = sand.u32 %s165, 1
        %s508 = smul.addr %s507, 8
        %s509 = scalar_lea.vmem [#allocation10], %s508
        // Predicated region
        $region53: #{tpu_custom_call.1} parent=35 // pred_check
          %p510 = pneg %p175
        $region54: #{tpu_custom_call.1} parent=35 // pred_check_branch
          %512 = sbr.rel (%p510) target = $region56
        $region55: #{tpu_custom_call.1} parent=35 // pred_region
          %s514 = ssub.s32 128, 128
          %515 = vsyncadd %s506, %s514
          %s516 = sadd.s32 %s30, %s29
          %s517 = smul.addr %s516, 128
          %s518 = scalar_lea.hbm %s4, %s517
          %s520 = sshll.u32 %s509, 4
          %s521 = int_to_ptr.vmem [resolvable:$true] %s520
          %523 = dma.vmem_to_hbm [thread:$0]  %s521, 128, %s518, %s506
        $region56: #{tpu_custom_call.1} parent=35 // pred_fallthru
          _
      $region36: #{tpu_custom_call.1} parent=5 // pred_fallthru
        _
      %p524 = scmp.le.s32.totalorder 2, %s19
      // Predicated region
      $region57: #{tpu_custom_call.1} parent=5 // pred_check
        %p525 = pneg %p524
      $region58: #{tpu_custom_call.1} parent=5 // pred_check_branch
        %527 = sbr.rel (%p525) target = $region60
      $region59: #{tpu_custom_call.1} parent=5 // pred_region
        %s528 = ssub.s32 %s19, 2
        // Predicated region
        $region61: #{tpu_custom_call.1} parent=59 // pred_check
          %p529 = pneg %p181
        $region62: #{tpu_custom_call.1} parent=59 // pred_check_branch
          %531 = sbr.rel (%p529) target = $region64
        $region63: #{tpu_custom_call.1} parent=59 // pred_region
          %s532 = sand.u32 %s166, 1
          %s533 = scalar_lea.sflag [#allocation6], %s532
          %s534 = sand.u32 %s166, 1
          %s535 = smul.addr %s534, 8
          %s536 = scalar_lea.vmem [#allocation10], %s535
          %537 = dma.done %s533, 128
        $region64: #{tpu_custom_call.1} parent=59 // pred_fallthru
          _
      $region60: #{tpu_custom_call.1} parent=5 // pred_fallthru
        _
    $region6: #{tpu_custom_call.1} parent=1 // loop_footer
      %s23 = sadd.s32 1, %s19
    $region7: #{tpu_custom_call.1} parent=1 // loop_footer_branch
      %18 = sbr.rel target = $region3
    $region8: #{tpu_custom_call.1} parent=1 // loop_exit
      _
    %538 = vsyncpa [#allocation5], 1
    %s539 = scalar_lea.sflag [#allocation5], 1
    %540 = vsyncpa %s539, 1
    %541 = vsyncpa [#allocation8], 1
    %s542 = scalar_lea.sflag [#allocation8], 1
    %543 = vsyncpa %s542, 1
    %544 = vsyncpa [#allocation6], 1
    %s545 = scalar_lea.sflag [#allocation6], 1
    %546 = vsyncpa %s545, 1

</llo_original>
